<compile_context>
chip_gen: v6e
topology: v6e:2x2x1
jax: 0.10.0
libtpu: 0.0.40
codegen_flags: <defaults>
</compile_context>

<pallas_src>
import jax
import jax.numpy as jnp
from jax.experimental import pallas as pl
from jax.experimental.pallas import tpu as pltpu


# Cap per-input block at 512K elements (~2 MiB f32): 2 inputs x 2 pipeline
# buffers = ~8 MiB, safely under the default scoped-VMEM limit on all chips.
_MAX_BLOCK_ELEMS = 512 * 1024


def _round_up(x, m):
    return ((x + m - 1) // m) * m


def _dice_reduce_kernel(pred_ref, target_ref, out_ref):
    # pred_ref/target_ref: (TM, TL) tile.  out_ref: (TM, 128) accumulator slab,
    # resident across the lane-chunk axis (grid axis 1).
    k = pl.program_id(1)

    @pl.when(k == 0)
    def _():
        out_ref[...] = jnp.zeros_like(out_ref)

    p = pred_ref[...].astype(jnp.float32)
    t = target_ref[...].astype(jnp.float32)

    # Lane-first reductions -> (TM, 1) partials (keeps live state small).
    s_int = jnp.sum(p * t, axis=-1, keepdims=True)
    s_p2 = jnp.sum(p * p, axis=-1, keepdims=True)
    s_t2 = jnp.sum(t * t, axis=-1, keepdims=True)

    # Pack the three per-row sums into lanes 0/1/2 of a full-width slab so the
    # store is lane-dense (no masked vst) and there is a single writeback.
    lane = jax.lax.broadcasted_iota(jnp.int32, out_ref.shape, 1)
    packed = (jnp.where(lane == 0, s_int, 0.0)
              + jnp.where(lane == 1, s_p2, 0.0)
              + jnp.where(lane == 2, s_t2, 0.0))
    out_ref[...] += packed


def _dice_partial_sums(pred, target):
    """Returns (intersect, sum_pred_sq, sum_target_sq), each of shape (B, C)."""
    B, C, H, W = pred.shape
    R = B * C
    L = H * W

    p2 = pred.reshape(R, L)
    t2 = target.reshape(R, L)

    # --- tile selection -----------------------------------------------------
    L128 = _round_up(L, 128)                       # lane axis multiple of 128
    TL = min(L128, _MAX_BLOCK_ELEMS)               # both are multiples of 128
    L_pad = _round_up(L, TL)

    R8 = _round_up(R, 8)                           # sublane axis multiple of 8
    tm_cap = max(8, (_MAX_BLOCK_ELEMS // TL) // 8 * 8)
    TM = min(R8, tm_cap)
    R_pad = _round_up(R, TM)

    # Zero-pad (exact: zeros add 0 to every partial sum).
    p2 = jnp.pad(p2, ((0, R_pad - R), (0, L_pad - L)))
    t2 = jnp.pad(t2, ((0, R_pad - R), (0, L_pad - L)))

    grid = (R_pad // TM, L_pad // TL)
    in_spec = pl.BlockSpec((TM, TL), lambda i, k: (i, k))
    out_spec = pl.BlockSpec((TM, 128), lambda i, k: (i, 0))

    in_itemsize = jnp.dtype(pred.dtype).itemsize

    out = pl.pallas_call(
        _dice_reduce_kernel,
        out_shape=jax.ShapeDtypeStruct((R_pad, 128), jnp.float32),
        grid_spec=pltpu.PrefetchScalarGridSpec(
            num_scalar_prefetch=0,
            grid=grid,
            in_specs=[in_spec, in_spec],
            out_specs=out_spec,
        ),
        compiler_params=pltpu.CompilerParams(
            # Row axis shards across TensorCores (v7x); lane-chunk axis is the
            # reduction and must be last + "arbitrary".
            dimension_semantics=("parallel", "arbitrary"),
            vmem_limit_bytes=32 << 20,
        ),
        cost_estimate=pl.CostEstimate(
            flops=6 * R_pad * L_pad,
            transcendentals=0,
            bytes_accessed=2 * R_pad * L_pad * in_itemsize + R_pad * 128 * 4,
        ),
    )(p2, t2)

    intersect = out[:R, 0].reshape(B, C)
    sum_p2 = out[:R, 1].reshape(B, C)
    sum_t2 = out[:R, 2].reshape(B, C)
    return intersect, sum_p2, sum_t2


def dice_loss(pred, target, smooth=1.0):
    """Pallas-backed equivalent of DICELoss.forward(pred, target).

    pred, target: (B, C, H, W) float arrays (NCHW; f32 or bf16).
    Returns a scalar float32 loss.
    """
    B, C, H, W = pred.shape
    intersect, sum_p2, sum_t2 = _dice_partial_sums(pred, target)

    denominator = sum_p2 + sum_t2                                      # (B, C)
    dice_score = (2.0 * intersect + smooth) / (denominator + smooth)   # (B, C)

    # Match PyTorch: for each class, loss_c = 1 - mean over batch of dice,
    # then average over classes.
    per_class = 1.0 - jnp.mean(dice_score, axis=0)                     # (C,)
    loss = jnp.sum(per_class) / C
    return loss


def _reference_dice_loss(pred, target, smooth=1.0):
    # Pure-JAX reference mirroring the PyTorch code exactly (for sanity check).
    pred = pred.astype(jnp.float32)
    target = target.astype(jnp.float32)
    C = target.shape[1]
    loss = 0.0
    for i in range(C):
        p = pred[:, i, :, :]
        t = target[:, i, :, :]
        intersect = jnp.sum(p * t, axis=(-1, -2))
        denom = jnp.sum(p ** 2, axis=(-1, -2)) + jnp.sum(t ** 2, axis=(-1, -2))
        dice = (2 * intersect + smooth) / (denom + smooth)
        loss = loss + (1 - jnp.mean(dice))
    return loss / C


if __name__ == "__main__":
    key = jax.random.PRNGKey(0)
    k1, k2, k3, k4 = jax.random.split(key, 4)

    jit_loss = jax.jit(dice_loss)

    # Case 1: aligned shapes, f32.
    B, C, H, W = 2, 4, 16, 16
    pred = jax.nn.sigmoid(jax.random.normal(k1, (B, C, H, W), dtype=jnp.float32))
    target = (jax.random.uniform(k2, (B, C, H, W)) > 0.5).astype(jnp.float32)
    loss = jax.block_until_ready(jit_loss(pred, target))
    ref = _reference_dice_loss(pred, target)
    assert jnp.allclose(loss, ref, atol=1e-5, rtol=1e-5), (loss, ref)

    # Case 2: unaligned shapes (exercises the zero-padding path), f32.
    B2, C2, H2, W2 = 2, 3, 10, 9
    pred2 = jax.nn.sigmoid(jax.random.normal(k3, (B2, C2, H2, W2), dtype=jnp.float32))
    target2 = (jax.random.uniform(k4, (B2, C2, H2, W2)) > 0.5).astype(jnp.float32)
    loss2 = jax.block_until_ready(jit_loss(pred2, target2))
    ref2 = _reference_dice_loss(pred2, target2)
    assert jnp.allclose(loss2, ref2, atol=1e-5, rtol=1e-5), (loss2, ref2)

    # Case 3: bf16 inputs (kernel upcasts to f32 internally).
    pred_bf = pred.astype(jnp.bfloat16)
    target_bf = target.astype(jnp.bfloat16)
    loss3 = jax.block_until_ready(jit_loss(pred_bf, target_bf))
    ref3 = _reference_dice_loss(pred_bf, target_bf)
    assert jnp.allclose(loss3, ref3, atol=1e-4, rtol=1e-4), (loss3, ref3)

    print("KERNEL_OK")
</pallas_src>

<mosaic_0001>
module attributes {stable_mosaic.version = 11 : i64} {
  func.func @_dice_reduce_kernel(%arg0: i32, %arg1: i32, %arg2: memref<8x256xf32, #tpu.memory_space<vmem>>, %arg3: memref<8x256xf32, #tpu.memory_space<vmem>>, %arg4: memref<8x128xf32, #tpu.memory_space<vmem>>) attributes {dimension_semantics = [#tpu.dimension_semantics<parallel>, #tpu.dimension_semantics<arbitrary>], iteration_bounds = array<i64: 1, 1>, scalar_prefetch = 0 : i64, scratch_operands = 0 : i64, tpu.core_type = #tpu.core_type<tc>, window_params = [{transform_indices = @transform_0, window_bounds = array<i64: 8, 256>}, {transform_indices = @transform_1, window_bounds = array<i64: 8, 256>}, {transform_indices = @transform_2, window_bounds = array<i64: 8, 128>}]} {
    %c0_i32 = arith.constant 0 : i32
    %0 = arith.cmpi eq, %arg1, %c0_i32 : i32
    %1 = arith.extui %0 : i1 to i32
    %c0_i32_0 = arith.constant 0 : i32
    %2 = arith.cmpi ne, %1, %c0_i32_0 : i32
    scf.if %2 {
      %cst_14 = arith.constant 0.000000e+00 : f32
      %38 = vector.broadcast %cst_14 : f32 to vector<8x128xf32>
      %c0_15 = arith.constant 0 : index
      %c0_16 = arith.constant 0 : index
      %39 = vector.load %arg4[%c0_15, %c0_16] : memref<8x128xf32, #tpu.memory_space<vmem>>, vector<8x128xf32>
      tpu.vector_store %arg4[%c0_15, %c0_16], %38 {strides = array<i32>} : memref<8x128xf32, #tpu.memory_space<vmem>>, vector<8x128xf32>,
    } else {
    }
    %c0 = arith.constant 0 : index
    %c0_1 = arith.constant 0 : index
    %3 = vector.load %arg2[%c0, %c0_1] : memref<8x256xf32, #tpu.memory_space<vmem>>, vector<8x256xf32>
    %c0_2 = arith.constant 0 : index
    %c0_3 = arith.constant 0 : index
    %4 = vector.load %arg3[%c0_2, %c0_3] : memref<8x256xf32, #tpu.memory_space<vmem>>, vector<8x256xf32>
    %5 = arith.mulf %3, %4 : vector<8x256xf32>
    %cst = arith.constant dense<0.000000e+00> : vector<8xf32>
    %6 = vector.multi_reduction <add>, %5, %cst [1] : vector<8x256xf32> to vector<8xf32>
    %7 = vector.shape_cast %6 : vector<8xf32> to vector<8x1xf32>
    %8 = arith.mulf %3, %3 : vector<8x256xf32>
    %cst_4 = arith.constant dense<0.000000e+00> : vector<8xf32>
    %9 = vector.multi_reduction <add>, %8, %cst_4 [1] : vector<8x256xf32> to vector<8xf32>
    %10 = vector.shape_cast %9 : vector<8xf32> to vector<8x1xf32>
    %11 = arith.mulf %4, %4 : vector<8x256xf32>
    %cst_5 = arith.constant dense<0.000000e+00> : vector<8xf32>
    %12 = vector.multi_reduction <add>, %11, %cst_5 [1] : vector<8x256xf32> to vector<8xf32>
    %13 = vector.shape_cast %12 : vector<8xf32> to vector<8x1xf32>
    %14 = tpu.iota {dimensions = array<i32: 1>} : vector<8x128xi32>
    %c0_i32_6 = arith.constant 0 : i32
    %15 = vector.broadcast %c0_i32_6 : i32 to vector<8x128xi32>
    %16 = arith.cmpi eq, %14, %15 : vector<8x128xi32>
    %cst_7 = arith.constant 0.000000e+00 : f32
    %17 = vector.shape_cast %7 : vector<8x1xf32> to vector<8x1xf32>
    %18 = vector.broadcast %17 : vector<8x1xf32> to vector<8x128xf32>
    %19 = vector.broadcast %cst_7 : f32 to vector<8x128xf32>
    %20 = arith.select %16, %18, %19 : vector<8x128xi1>, vector<8x128xf32>
    %c1_i32 = arith.constant 1 : i32
    %21 = vector.broadcast %c1_i32 : i32 to vector<8x128xi32>
    %22 = arith.cmpi eq, %14, %21 : vector<8x128xi32>
    %cst_8 = arith.constant 0.000000e+00 : f32
    %23 = vector.shape_cast %10 : vector<8x1xf32> to vector<8x1xf32>
    %24 = vector.broadcast %23 : vector<8x1xf32> to vector<8x128xf32>
    %25 = vector.broadcast %cst_8 : f32 to vector<8x128xf32>
    %26 = arith.select %22, %24, %25 : vector<8x128xi1>, vector<8x128xf32>
    %27 = arith.addf %20, %26 : vector<8x128xf32>
    %c2_i32 = arith.constant 2 : i32
    %28 = vector.broadcast %c2_i32 : i32 to vector<8x128xi32>
    %29 = arith.cmpi eq, %14, %28 : vector<8x128xi32>
    %cst_9 = arith.constant 0.000000e+00 : f32
    %30 = vector.shape_cast %13 : vector<8x1xf32> to vector<8x1xf32>
    %31 = vector.broadcast %30 : vector<8x1xf32> to vector<8x128xf32>
    %32 = vector.broadcast %cst_9 : f32 to vector<8x128xf32>
    %33 = arith.select %29, %31, %32 : vector<8x128xi1>, vector<8x128xf32>
    %34 = arith.addf %27, %33 : vector<8x128xf32>
    %c0_10 = arith.constant 0 : index
    %c0_11 = arith.constant 0 : index
    %35 = vector.load %arg4[%c0_10, %c0_11] : memref<8x128xf32, #tpu.memory_space<vmem>>, vector<8x128xf32>
    %36 = arith.addf %35, %34 : vector<8x128xf32>
    %c0_12 = arith.constant 0 : index
    %c0_13 = arith.constant 0 : index
    %37 = vector.load %arg4[%c0_12, %c0_13] : memref<8x128xf32, #tpu.memory_space<vmem>>, vector<8x128xf32>
    tpu.vector_store %arg4[%c0_12, %c0_13], %36 {strides = array<i32>} : memref<8x128xf32, #tpu.memory_space<vmem>>, vector<8x128xf32>,
    return
  }
  func.func @transform_0(%arg0: i32, %arg1: i32) -> (i32, i32) {
    %c0_i32 = arith.constant 0 : i32
    return %arg0, %arg1 : i32, i32
  }
  func.func @transform_1(%arg0: i32, %arg1: i32) -> (i32, i32) {
    %c0_i32 = arith.constant 0 : i32
    return %arg0, %arg1 : i32, i32
  }
  func.func @transform_2(%arg0: i32, %arg1: i32) -> (i32, i32) {
    %c0_i32 = arith.constant 0 : i32
    %c0_i32_0 = arith.constant 0 : i32
    return %arg0, %c0_i32 : i32, i32
  }
}

</mosaic_0001>

<llo_original>
// kernel: dice_loss.1
$region0: #{dice_loss.1}
  #allocation0 [shape = 'u32[]', space=smem, size = 0x4, offset = 0x4, fixed_abs, tag = 'smem constant byte address 0x4 - core index']
  #allocation1 [shape = 'u32[144,128]{1,0:T(1,128)}', space=vmem, size = 0x12000, scoped, tag = 'internal scratch']
  %s0 = inlined_call_operand.vmem [shape: f32[8,256], index: 0, kind: input, shape index: {}]
  %s1 = inlined_call_operand.vmem [shape: f32[8,256], index: 1, kind: input, shape index: {}]
  %s2 = inlined_call_operand.vmem [shape: f32[8,128], index: 2, kind: output, shape index: {}]
  %s3 = sld [smem:[#allocation0]]
  $region22: #{dice_loss.1} parent=0
    _
  %s5 = ssub.s32 1, %s3
  %s6 = scalar_select 0, %s5, %s3
  // Predicated region
  $region2: #{dice_loss.1} parent=0 // pred_check
    _
  $region3: #{dice_loss.1} parent=0 // pred_check_branch
    %8 = sbr.rel (0) target = $region5
  $region4: #{dice_loss.1} parent=0 // pred_region
    _
  $region5: #{dice_loss.1} parent=0 // pred_fallthru
    _
  // Predicated region
  $region6: #{dice_loss.1} parent=0 // pred_check
    _
  $region7: #{dice_loss.1} parent=0 // pred_check_branch
    %10 = sbr.rel (0) target = $region9
  $region8: #{dice_loss.1} parent=0 // pred_region
    _
  $region9: #{dice_loss.1} parent=0 // pred_fallthru
    _
  %p11 = scmp.eq.s32.totalorder 0, 0
  // Predicated region
  $region10: #{dice_loss.1} parent=0 // pred_check
    %p12 = pneg %p11
  $region11: #{dice_loss.1} parent=0 // pred_check_branch
    %14 = sbr.rel (%p12) target = $region13
  $region12: #{dice_loss.1} parent=0 // pred_region
    %15 = vst [vmem:[%s2] sm:$0xff] 0.0
  $region13: #{dice_loss.1} parent=0 // pred_fallthru
    _
  %v16 = vld [vmem:[%s0] sm:$0xff]
  %v17 = vld [vmem:[%s0 + $0x8] sm:$0xff]
  %v18 = vld [vmem:[%s1] sm:$0xff]
  %v19 = vld [vmem:[%s1 + $0x8] sm:$0xff]
  %v20 = vmul.f32 %v16, %v18
  %v21 = vmul.f32 %v17, %v19
  %v22 = vadd.f32 %v20, %v21
  %23 = vadd.xlane.f32.xlu0 %v22
  %v24 = vpop.xlane.xlu0 %23
  %v25 = vmul.f32 %v16, %v16
  %v26 = vmul.f32 %v17, %v17
  %v27 = vadd.f32 %v25, %v26
  %28 = vadd.xlane.f32.xlu0 %v27
  %v29 = vpop.xlane.xlu0 %28
  %v30 = vmul.f32 %v18, %v18
  %v31 = vmul.f32 %v19, %v19
  %v32 = vadd.f32 %v30, %v31
  %33 = vadd.xlane.f32.xlu0 %v32
  %v34 = vpop.xlane.xlu0 %33
  %v35 = vlaneseq
  %v36 = vand.u32 %v35, 127
  %vm37 = vcmp.eq.s32.totalorder %v36, 0
  %v38 = vsel %vm37, %v24, 0.0
  %vm39 = vcmp.eq.s32.totalorder %v36, 1
  %v40 = vsel %vm39, %v29, 0.0
  %v41 = vadd.f32 %v38, %v40
  %vm42 = vcmp.eq.s32.totalorder %v36, 2
  %v43 = vsel %vm42, %v34, 0.0
  %v44 = vadd.f32 %v41, %v43
  %v45 = vld [vmem:[%s2] sm:$0xff]
  %v46 = vadd.f32 %v45, %v44
  %47 = vst [vmem:[%s2] sm:$0xff] %v46
  // Predicated region
  $region14: #{dice_loss.1} parent=0 // pred_check
    _
  $region15: #{dice_loss.1} parent=0 // pred_check_branch
    %49 = sbr.rel (0) target = $region17
  $region16: #{dice_loss.1} parent=0 // pred_region
    _
  $region17: #{dice_loss.1} parent=0 // pred_fallthru
    _
  // Predicated region
  $region18: #{dice_loss.1} parent=0 // pred_check
    _
  $region19: #{dice_loss.1} parent=0 // pred_check_branch
    %51 = sbr.rel (0) target = $region21
  $region20: #{dice_loss.1} parent=0 // pred_region
    _
  $region21: #{dice_loss.1} parent=0 // pred_fallthru
    _

</llo_original>
